<compile_context>
chip_gen: v5e
topology: v5e:2x2
jax: 0.10.0
libtpu: 0.0.40
codegen_flags: <defaults>
</compile_context>

<pallas_src>
import jax
import jax.numpy as jnp
from jax.experimental import pallas as pl
from jax.experimental.pallas import tpu as pltpu


def _round_up(a: int, b: int) -> int:
    return ((a + b - 1) // b) * b


# ---------------------------------------------------------------------------
# Kernels
# ---------------------------------------------------------------------------
def _head_kernel_single_k(x_ref, w_ref, b_ref, o_ref):
    # x_ref: [tm, K]  w_ref: [K, Np] (pre-transposed)  b_ref: [1, Np] f32
    # One MXU dot over the full feature dim, f32 accumulate, fused bias add,
    # lane-dense (multiple-of-128) unmasked store.
    o_ref[...] = (
        jnp.dot(x_ref[...], w_ref[...], preferred_element_type=jnp.float32)
        + b_ref[...]
    ).astype(o_ref.dtype)


def _head_kernel_tiled_k(x_ref, w_ref, b_ref, o_ref, acc_ref):
    # Fallback for very large feature dims: K is tiled, acc lives in VMEM f32.
    k = pl.program_id(2)

    @pl.when(k == 0)
    def _():
        # Initialize the accumulator with the broadcast bias — saves a separate
        # [tm, tn] VPU pass on the final writeback.
        acc_ref[...] = jnp.broadcast_to(b_ref[...], acc_ref.shape)

    acc_ref[...] += jnp.dot(
        x_ref[...], w_ref[...], preferred_element_type=jnp.float32)

    @pl.when(k == pl.num_programs(2) - 1)
    def _():
        o_ref[...] = acc_ref[...].astype(o_ref.dtype)


# ---------------------------------------------------------------------------
# Wrapper
# ---------------------------------------------------------------------------
def linear_classification_head(x, weight, bias, *, out_dtype=None):
    """
    x      : [bs, n_vars, d_model, num_patch]
    weight : [n_classes, n_vars * d_model]   (native PyTorch nn.Linear layout)
    bias   : [n_classes]
    returns: [bs, n_classes]
    """
    bs = x.shape[0]
    # Flatten (row-major, matches torch.nn.Flatten(start_dim=1)). Pure reshape.
    xf = x.reshape(bs, -1)
    feat = xf.shape[1]
    n_classes = weight.shape[0]
    assert weight.shape[1] == feat, (
        "flattened feature dim must equal linear in_features "
        f"({feat} vs {weight.shape[1]}); num_patch must be 1")

    dtype = xf.dtype
    isize = jnp.dtype(dtype).itemsize
    out_dtype = dtype if out_dtype is None else out_dtype
    osize = jnp.dtype(out_dtype).itemsize

    # Dropout: inference mode -> identity.
    # TODO(synk): training-mode dropout (mask + scale via pltpu PRNG) omitted.

    # ---- Parameter prep (tiny tensors; done once, outside the hot stream) ----
    # Same dtype as activations so the MXU runs its fast single-dtype path.
    w = jnp.asarray(weight, dtype)
    b = jnp.asarray(bias, jnp.float32)

    # Lane-dense N: pad the *tiny* weight/bias only; never the activations.
    Np = _round_up(max(n_classes, 1), 128)
    wt = w.T                                   # [feat, n_classes]
    if Np != n_classes:
        wt = jnp.pad(wt, ((0, 0), (0, Np - n_classes)))
        b = jnp.pad(b, (0, Np - n_classes))
    bp = b.reshape(1, Np)

    # ---- M tiling ----
    if bs <= 128:
        tm = bs          # full-dim exemption: no sublane constraint, no pad
    else:
        tm = 128         # >=2 M blocks -> megacore can shard M on v7x
    Mp = _round_up(bs, tm)
    xp = xf if Mp == bs else jnp.pad(xf, ((0, Mp - bs), (0, 0)))

    # ---- Path selection: single K step whenever the tiles fit scoped VMEM ----
    # (budgeted against v5e's 16 MiB default so no vmem_limit override needed)
    vmem_single_k = (2 * (tm * feat + feat * Np) * isize
                     + 2 * tm * Np * osize + 2 * Np * 4)
    single_k = vmem_single_k <= 12 * 1024 * 1024

    cost = pl.CostEstimate(
        flops=2 * Mp * feat * Np,
        transcendentals=0,
        bytes_accessed=(Mp * feat + feat * Np) * isize + Np * 4 + Mp * Np * osize,
    )

    if single_k:
        grid = (Mp // tm,)
        out = pl.pallas_call(
            _head_kernel_single_k,
            out_shape=jax.ShapeDtypeStruct((Mp, Np), out_dtype),
            grid_spec=pltpu.PrefetchScalarGridSpec(
                num_scalar_prefetch=0,
                grid=grid,
                in_specs=[
                    pl.BlockSpec((tm, feat), lambda i: (i, 0)),   # activations
                    pl.BlockSpec((feat, Np), lambda i: (0, 0)),   # weight (resident)
                    pl.BlockSpec((1, Np), lambda i: (0, 0)),      # bias
                ],
                out_specs=pl.BlockSpec((tm, Np), lambda i: (i, 0)),
            ),
            compiler_params=pltpu.CompilerParams(
                dimension_semantics=("parallel",)),
            cost_estimate=cost,
        )(xp, wt, bp)
    else:
        # ---- K-tiled fallback (very large feature dims only) ----
        tn = Np if Np <= 512 else 512
        tk = 2048 if isize <= 2 else 1024
        Kp = _round_up(feat, tk)
        NpT = _round_up(Np, tn)
        if Kp != feat:
            xp = jnp.pad(xp, ((0, 0), (0, Kp - feat)))
        if (Kp != feat) or (NpT != Np):
            wt = jnp.pad(wt, ((0, Kp - feat), (0, NpT - Np)))
            bp = jnp.pad(bp, ((0, 0), (0, NpT - Np)))
        Np = NpT

        grid = (Mp // tm, Np // tn, Kp // tk)
        out = pl.pallas_call(
            _head_kernel_tiled_k,
            out_shape=jax.ShapeDtypeStruct((Mp, Np), out_dtype),
            grid_spec=pltpu.PrefetchScalarGridSpec(
                num_scalar_prefetch=0,
                grid=grid,
                in_specs=[
                    pl.BlockSpec((tm, tk), lambda i, j, k: (i, k)),   # activations
                    pl.BlockSpec((tk, tn), lambda i, j, k: (k, j)),   # weight.T tiles
                    pl.BlockSpec((1, tn), lambda i, j, k: (0, j)),    # bias
                ],
                out_specs=pl.BlockSpec((tm, tn), lambda i, j, k: (i, j)),
                scratch_shapes=[pltpu.VMEM((tm, tn), jnp.float32)],
            ),
            compiler_params=pltpu.CompilerParams(
                dimension_semantics=("parallel", "parallel", "arbitrary")),
            cost_estimate=cost,
        )(xp, wt, bp)

    # Slice off padded rows / class lanes (no-ops if nothing was padded).
    if Mp != bs or Np != n_classes:
        out = out[:bs, :n_classes]
    return out


if __name__ == "__main__":
    # Small shapes consistent with the module's forward:
    # bs=2, n_vars=4, d_model=32, num_patch=1, n_classes=8
    bs, n_vars, d_model, num_patch, n_classes = 2, 4, 32, 1, 8
    feat = n_vars * d_model

    key = jax.random.PRNGKey(0)
    kx, kw, kb = jax.random.split(key, 3)

    x = jax.random.normal(kx, (bs, n_vars, d_model, num_patch), dtype=jnp.float32)
    # Deterministic param init (shapes from nn.Linear(n_vars*d_model, n_classes)).
    bound = 1.0 / (feat ** 0.5)
    weight = jax.random.uniform(kw, (n_classes, feat), jnp.float32, -bound, bound)
    bias = jax.random.uniform(kb, (n_classes,), jnp.float32, -bound, bound)

    y = linear_classification_head(x, weight, bias)
    y = jax.block_until_ready(y)

    # Reference check in plain JAX (same math).
    y_ref = x.reshape(bs, -1) @ weight.T + bias
    assert y.shape == (bs, n_classes)
    assert jnp.allclose(y, y_ref, atol=1e-4, rtol=1e-4)

    print("KERNEL_OK")
</pallas_src>

<mosaic_0001>
module attributes {stable_mosaic.version = 11 : i64} {
  func.func @_head_kernel_single_k(%arg0: i32, %arg1: memref<2x128xf32, #tpu.memory_space<vmem>>, %arg2: memref<128x128xf32, #tpu.memory_space<vmem>>, %arg3: memref<1x128xf32, #tpu.memory_space<vmem>>, %arg4: memref<2x128xf32, #tpu.memory_space<vmem>>) attributes {dimension_semantics = [#tpu.dimension_semantics<parallel>], iteration_bounds = array<i64: 1>, scalar_prefetch = 0 : i64, scratch_operands = 0 : i64, tpu.core_type = #tpu.core_type<tc>, window_params = [{transform_indices = @transform_0, window_bounds = array<i64: 2, 128>}, {pipeline_mode = #tpu.pipeline_mode<synchronous>, transform_indices = @transform_1, window_bounds = array<i64: 128, 128>}, {pipeline_mode = #tpu.pipeline_mode<synchronous>, transform_indices = @transform_2, window_bounds = array<i64: 1, 128>}, {transform_indices = @transform_3, window_bounds = array<i64: 2, 128>}]} {
    %c0 = arith.constant 0 : index
    %c0_0 = arith.constant 0 : index
    %0 = vector.load %arg1[%c0, %c0_0] : memref<2x128xf32, #tpu.memory_space<vmem>>, vector<2x128xf32>
    %c0_1 = arith.constant 0 : index
    %c0_2 = arith.constant 0 : index
    %1 = vector.load %arg2[%c0_1, %c0_2] : memref<128x128xf32, #tpu.memory_space<vmem>>, vector<128x128xf32>
    %cst = arith.constant dense<0.000000e+00> : vector<2x128xf32>
    %2 = tpu.matmul %0, %1, %cst {dimension_numbers = #tpu.dot_dimension_numbers<[1], [0], [0], [1], [0, 0, 1, 1], [], []>} : vector<2x128xf32>, vector<128x128xf32>, vector<2x128xf32> -> vector<2x128xf32>
    %c0_3 = arith.constant 0 : index
    %c0_4 = arith.constant 0 : index
    %3 = vector.load %arg3[%c0_3, %c0_4] : memref<1x128xf32, #tpu.memory_space<vmem>>, vector<1x128xf32>
    %4 = vector.broadcast %3 : vector<1x128xf32> to vector<2x128xf32>
    %5 = arith.addf %2, %4 : vector<2x128xf32>
    %c0_5 = arith.constant 0 : index
    %c0_6 = arith.constant 0 : index
    %6 = vector.load %arg4[%c0_5, %c0_6] : memref<2x128xf32, #tpu.memory_space<vmem>>, vector<2x128xf32>
    tpu.vector_store %arg4[%c0_5, %c0_6], %5 {strides = array<i32>} : memref<2x128xf32, #tpu.memory_space<vmem>>, vector<2x128xf32>,
    return
  }
  func.func @transform_0(%arg0: i32) -> (i32, i32) {
    %c0_i32 = arith.constant 0 : i32
    %c0_i32_0 = arith.constant 0 : i32
    return %arg0, %c0_i32 : i32, i32
  }
  func.func @transform_1(%arg0: i32) -> (i32, i32) {
    %c0_i32 = arith.constant 0 : i32
    %c0_i32_0 = arith.constant 0 : i32
    %c0_i32_1 = arith.constant 0 : i32
    return %c0_i32, %c0_i32_0 : i32, i32
  }
  func.func @transform_2(%arg0: i32) -> (i32, i32) {
    %c0_i32 = arith.constant 0 : i32
    %c0_i32_0 = arith.constant 0 : i32
    %c0_i32_1 = arith.constant 0 : i32
    return %c0_i32, %c0_i32_0 : i32, i32
  }
  func.func @transform_3(%arg0: i32) -> (i32, i32) {
    %c0_i32 = arith.constant 0 : i32
    %c0_i32_0 = arith.constant 0 : i32
    return %arg0, %c0_i32 : i32, i32
  }
}

</mosaic_0001>

<llo_original>
// kernel: tpu_custom_call.1
$region0: #{tpu_custom_call.1}
  #allocation0 [shape = 'u32[]', space=smem, size = 0x4, offset = 0x4, fixed_abs, tag = 'smem constant byte address 0x4 - core index']
  #allocation1 [shape = 'u32[72,128]{1,0:T(1,128)}', space=vmem, size = 0x9000, scoped, tag = 'internal scratch']
  %s0 = inlined_call_operand.hbm [shape: f32[2,128], index: 0, kind: input, shape index: {}]
  %s1 = inlined_call_operand.hbm [shape: f32[128,128], index: 1, kind: input, shape index: {}]
  %s2 = inlined_call_operand.vmem [shape: f32[1,128], index: 2, kind: input, shape index: {}]
  %s3 = inlined_call_operand.hbm [shape: f32[2,128], index: 3, kind: output, shape index: {}]
  %s4 = sld [smem:[#allocation0]]
  $region30: #{tpu_custom_call.1} parent=0
    _
  %s6 = ssub.s32 1, %s4
  %s7 = scalar_select 0, %s6, %s4
  $region1: #{tpu_custom_call.1} parent=0
    #allocation2 [shape = 'u8[1024]{0}', space=vmem, size = 0x400, scoped, tag = 'input window, operand 0, single buffered']
    #allocation3 [shape = 's32[1]{0}', space=sflag, size = 0x4, scoped, tag = 'scoped memory for tpu_custom_call.1']
    #allocation4 [shape = 's32[1]{0}', space=sflag, size = 0x4, scoped, tag = 'scoped memory for tpu_custom_call.1']
    #allocation5 [shape = 'u8[65536]{0}', space=vmem, size = 0x10000, scoped, tag = 'input window, operand 1, single buffered']
    #allocation6 [shape = 's32[1]{0}', space=sflag, size = 0x4, scoped, tag = 'scoped memory for tpu_custom_call.1']
    #allocation7 [shape = 'u8[1024]{0}', space=vmem, size = 0x400, scoped, tag = 'output window, operand 0, single buffered']
    %8 = vsyncpa [#allocation3], 0
    %9 = vsyncpa [#allocation6], 0
    %10 = vsyncpa [#allocation4], 0
    // Predicated region
    $region2: #{tpu_custom_call.1} parent=1 // pred_check
      _
    $region3: #{tpu_custom_call.1} parent=1 // pred_check_branch
      %12 = sbr.rel (0) target = $region5
    $region4: #{tpu_custom_call.1} parent=1 // pred_region
      %14 = vsyncadd [#allocation3], 0
      %s16 = sshll.u32 %s0, 4
      %s17 = int_to_ptr.hbm [resolvable:$true] %s16
      %s18 = sshll.u32 [#allocation2], 4
      %s19 = int_to_ptr.vmem [resolvable:$true] %s18
      %21 = dma.hbm_to_vmem [thread:$0]  %s17, 32, %s19, [#allocation3]
    $region5: #{tpu_custom_call.1} parent=1 // pred_fallthru
      _
    // Predicated region
    $region6: #{tpu_custom_call.1} parent=1 // pred_check
      _
    $region7: #{tpu_custom_call.1} parent=1 // pred_check_branch
      %23 = sbr.rel (0) target = $region9
    $region8: #{tpu_custom_call.1} parent=1 // pred_region
      %25 = vsyncadd [#allocation6], 0
      %s26 = sshll.u32 %s1, 4
      %s27 = int_to_ptr.hbm [resolvable:$true] %s26
      %s28 = sshll.u32 [#allocation5], 4
      %s29 = int_to_ptr.vmem [resolvable:$true] %s28
      %34 = dma.hbm_to_vmem [thread:$0]  %s27, 2048, %s29, [#allocation6], 128, 128, 8
    $region9: #{tpu_custom_call.1} parent=1 // pred_fallthru
      _
    // Predicated region
    $region10: #{tpu_custom_call.1} parent=1 // pred_check
      _
    $region11: #{tpu_custom_call.1} parent=1 // pred_check_branch
      %36 = sbr.rel (0) target = $region13
    $region12: #{tpu_custom_call.1} parent=1 // pred_region
      _
    $region13: #{tpu_custom_call.1} parent=1 // pred_fallthru
      _
    // Predicated region
    $region14: #{tpu_custom_call.1} parent=1 // pred_check
      _
    $region15: #{tpu_custom_call.1} parent=1 // pred_check_branch
      %38 = sbr.rel (0) target = $region17
    $region16: #{tpu_custom_call.1} parent=1 // pred_region
      %40 = dma.done [#allocation3], 32
    $region17: #{tpu_custom_call.1} parent=1 // pred_fallthru
      _
    // Predicated region
    $region18: #{tpu_custom_call.1} parent=1 // pred_check
      _
    $region19: #{tpu_custom_call.1} parent=1 // pred_check_branch
      %42 = sbr.rel (0) target = $region21
    $region20: #{tpu_custom_call.1} parent=1 // pred_region
      %44 = dma.done [#allocation6], 2048
    $region21: #{tpu_custom_call.1} parent=1 // pred_fallthru
      _
    %v45 = vld [vmem:[#allocation2] sm:$0x3]
    %v46 = vld [vmem:[#allocation5] sm:$0xff]
    %v47 = vld [vmem:[#allocation5 + $0x8] sm:$0xff]
    %v48 = vld [vmem:[#allocation5 + $0x10] sm:$0xff]
    %v49 = vld [vmem:[#allocation5 + $0x18] sm:$0xff]
    %v50 = vld [vmem:[#allocation5 + $0x20] sm:$0xff]
    %v51 = vld [vmem:[#allocation5 + $0x28] sm:$0xff]
    %v52 = vld [vmem:[#allocation5 + $0x30] sm:$0xff]
    %v53 = vld [vmem:[#allocation5 + $0x38] sm:$0xff]
    %v54 = vld [vmem:[#allocation5 + $0x40] sm:$0xff]
    %v55 = vld [vmem:[#allocation5 + $0x48] sm:$0xff]
    %v56 = vld [vmem:[#allocation5 + $0x50] sm:$0xff]
    %v57 = vld [vmem:[#allocation5 + $0x58] sm:$0xff]
    %v58 = vld [vmem:[#allocation5 + $0x60] sm:$0xff]
    %v59 = vld [vmem:[#allocation5 + $0x68] sm:$0xff]
    %v60 = vld [vmem:[#allocation5 + $0x70] sm:$0xff]
    %v61 = vld [vmem:[#allocation5 + $0x78] sm:$0xff]
    %v62 = vld [vmem:[%s2] sm:$0x1]
    %v64 = vperm.slane %v62, 0
    %66 = vmatpush.msra.mxu0 %v61
    %67 = vmatpush.msra.mxu0 %v60
    %68 = vmatpush.msra.mxu0 %v59
    %69 = vmatpush.msra.mxu0 %v58
    %70 = vmatpush.msra.mxu0 %v57
    %71 = vmatpush.msra.mxu0 %v56
    %72 = vmatpush.msra.mxu0 %v55
    %73 = vmatpush.msra.mxu0 %v54
    %74 = vmatpush.msra.mxu0 %v53
    %75 = vmatpush.msra.mxu0 %v52
    %76 = vmatpush.msra.mxu0 %v51
    %77 = vmatpush.msra.mxu0 %v50
    %78 = vmatpush.msra.mxu0 %v49
    %79 = vmatpush.msra.mxu0 %v48
    %80 = vmatpush.msra.mxu0 %v47
    %81 = vmatpush.msra.mxu0 %v46
    %82 = vmatmul.f32.gmra.mxu0 %v45
    %v83 = vpop.f32.mrf.mxu0
    %v84 = vadd.f32 %v64, %v83
    %85 = vdwg.mxu0
    %86 = vst [vmem:[#allocation7] sm:$0x3] %v84
    // Predicated region
    $region22: #{tpu_custom_call.1} parent=1 // pred_check
      _
    $region23: #{tpu_custom_call.1} parent=1 // pred_check_branch
      %88 = sbr.rel (0) target = $region25
    $region24: #{tpu_custom_call.1} parent=1 // pred_region
      %90 = vsyncadd [#allocation4], 0
      %s92 = sshll.u32 [#allocation7], 4
      %s93 = int_to_ptr.vmem [resolvable:$true] %s92
      %s94 = sshll.u32 %s3, 4
      %s95 = int_to_ptr.hbm [resolvable:$true] %s94
      %97 = dma.vmem_to_hbm [thread:$0]  %s93, 32, %s95, [#allocation4]
    $region25: #{tpu_custom_call.1} parent=1 // pred_fallthru
      _
    // Predicated region
    $region26: #{tpu_custom_call.1} parent=1 // pred_check
      _
    $region27: #{tpu_custom_call.1} parent=1 // pred_check_branch
      %99 = sbr.rel (0) target = $region29
    $region28: #{tpu_custom_call.1} parent=1 // pred_region
      %101 = dma.done [#allocation4], 32
    $region29: #{tpu_custom_call.1} parent=1 // pred_fallthru
      _
    %102 = vsyncpa [#allocation3], 1
    %103 = vsyncpa [#allocation6], 1
    %104 = vsyncpa [#allocation4], 1

</llo_original>
